<compile_context>
chip_gen: v7x
topology: tpu7x:2x2x1
jax: 0.10.0
libtpu: 0.0.40
codegen_flags: <defaults>
</compile_context>

<pallas_src>
import numpy as np
import jax
import jax.numpy as jnp
from jax.experimental import pallas as pl
from jax.experimental.pallas import tpu as pltpu

# ---------------- small synthetic configuration -----------------------------
B = 2            # batch
C_IN = 3         # image channels
H = W = 32       # image spatial
PATCH = 4        # stand-in backbone downsample factor
HF = H // PATCH  # feature spatial (8)
WF = W // PATCH
S = HF * WF      # pixels per image in feature map (64)
CC = 4           # cam_channels
HC = WC = 16     # cam spatial
T = HC * WC      # pixels per image in cams (256)
CF = 128         # backbone out_channels (1792 in real EfficientNet-B4, shrunk)
K_IN = C_IN * PATCH * PATCH   # 48
NUM_CLASSES = 10
NC_PAD = 128     # lane-dense classifier output width
BN_EPS = 1e-5


# ---------------- constant interpolation matrix (built once, numpy) ---------
def _bilinear_matrix_np(out_size, in_size):
    """Row-stochastic matrix reproducing F.interpolate(bilinear, align_corners=False)."""
    scale = in_size / out_size
    o = np.arange(out_size, dtype=np.float64)
    src = np.maximum((o + 0.5) * scale - 0.5, 0.0)
    i0 = np.minimum(np.floor(src).astype(np.int64), in_size - 1)
    frac = src - i0
    i1 = np.minimum(i0 + 1, in_size - 1)
    m = np.zeros((out_size, in_size), np.float32)
    rows = np.arange(out_size)
    np.add.at(m, (rows, i0), (1.0 - frac).astype(np.float32))
    np.add.at(m, (rows, i1), frac.astype(np.float32))
    return m


_A_MAT_NP = _bilinear_matrix_np(HF, HC)          # (HF, HC)
_B_MAT_NP = _bilinear_matrix_np(WF, WC)          # (WF, WC)
_M_NP = np.kron(_A_MAT_NP, _B_MAT_NP)            # (S, T), per-image resize matrix


# ---------------- Pallas kernel ----------------------------------------------
def _fused_kernel(x_ref, wfeat_ref, cams_ref, m_ref, w2_ref, w1_ref,
                  shift_ref, wcls_ref, bcls_ref, out_ref):
    # TODO(synk): the pretrained torchvision EfficientNet-B4 backbone
    # (base_model.features + checkpoint load) has no clean Pallas equivalent;
    # a deterministic linear patch-projection stand-in produces the (S, CF)
    # feature slab instead.
    feats = jnp.dot(x_ref[...], wfeat_ref[...],
                    preferred_element_type=jnp.float32)          # (S, CF) f32

    # cams branch of the 1x1 conv: bilinear resize FIRST (intermediate is only
    # (S, CC)), then channel mix.  Exact: both ops are linear.
    cams_rs = jnp.dot(m_ref[...], cams_ref[...],
                      preferred_element_type=jnp.float32)        # (S, CC)
    yc = jnp.dot(cams_rs.astype(jnp.bfloat16), w2_ref[...],
                 preferred_element_type=jnp.float32)             # (S, CF)

    # features branch of the 1x1 conv (BN scale already folded into w1/w2).
    yf = jnp.dot(feats.astype(jnp.bfloat16), w1_ref[...],
                 preferred_element_type=jnp.float32)             # (S, CF)

    # conv bias + BatchNorm (inference) folded into a single shift; ReLU.
    y = jnp.maximum(yf + yc + shift_ref[...], 0.0)               # (S, CF)

    # adaptive_avg_pool2d(x, 1).squeeze(): spatial SUM here; the 1/S factor is
    # pre-folded into the classifier weight in the wrapper.
    pooled = jnp.sum(y, axis=0, keepdims=True)                   # (1, CF)

    # classifier Linear, lane-padded to NC_PAD columns (unmasked lane-dense store).
    out_ref[...] = (jnp.dot(pooled, wcls_ref[...],
                            preferred_element_type=jnp.float32)
                    + bcls_ref[...])                             # (1, NC_PAD)


# ---------------- parameters --------------------------------------------------
def init_params(key):
    ks = jax.random.split(key, 10)
    return {
        "w_feat": 0.1 * jax.random.normal(ks[0], (K_IN, CF), jnp.float32),
        "w1":     0.1 * jax.random.normal(ks[1], (CF, CF), jnp.float32),   # conv weight, feature rows
        "w2":     0.1 * jax.random.normal(ks[2], (CC, CF), jnp.float32),   # conv weight, cam rows
        "b_conv": 0.1 * jax.random.normal(ks[3], (CF,), jnp.float32),
        "gamma":  0.5 + jax.random.uniform(ks[4], (CF,), jnp.float32),
        "beta":   0.1 * jax.random.normal(ks[5], (CF,), jnp.float32),
        "r_mean": 0.1 * jax.random.normal(ks[6], (CF,), jnp.float32),
        "r_var":  0.5 + jax.random.uniform(ks[7], (CF,), jnp.float32),
        "w_cls":  0.1 * jax.random.normal(ks[8], (CF, NUM_CLASSES), jnp.float32),
        "b_cls":  0.1 * jax.random.normal(ks[9], (NUM_CLASSES,), jnp.float32),
    }


# ---------------- wrapper ------------------------------------------------------
def efficientnet_b4_with_elayer(x, cams, p):
    # --- layout glue (plain JAX): per-image channels-last slabs, bf16 MXU operands
    x3d = (x.reshape(B, C_IN, HF, PATCH, WF, PATCH)
            .transpose(0, 2, 4, 1, 3, 5)
            .reshape(B, S, K_IN)).astype(jnp.bfloat16)              # (B, S, 48)
    cams3d = cams.transpose(0, 2, 3, 1).reshape(B, T, CC).astype(jnp.bfloat16)

    m = jnp.asarray(_M_NP, dtype=jnp.bfloat16)                      # (S, T), shared across batch

    # BN (inference) folded into the 1x1-conv weights:
    #   relu((f@w1 + c@w2 + b) * s + t) == relu(f@(w1*s) + c@(w2*s) + (b*s + t))
    scale = p["gamma"] / jnp.sqrt(p["r_var"] + BN_EPS)              # (CF,)
    shift = (p["beta"] - p["r_mean"] * scale + p["b_conv"] * scale)
    w1s = (p["w1"] * scale[None, :]).astype(jnp.bfloat16)
    w2s = (p["w2"] * scale[None, :]).astype(jnp.bfloat16)
    w_feat = p["w_feat"].astype(jnp.bfloat16)
    shift2 = shift.reshape(1, CF).astype(jnp.float32)

    # lane-dense classifier: pad NUM_CLASSES -> NC_PAD columns (sliced back after);
    # fold the adaptive-avg-pool 1/S factor into the (f32) classifier weight.
    w_cls_p = jnp.zeros((CF, NC_PAD), jnp.float32).at[:, :NUM_CLASSES].set(
        p["w_cls"] * (1.0 / S))
    b_cls_p = jnp.zeros((1, NC_PAD), jnp.float32).at[:, :NUM_CLASSES].set(p["b_cls"])

    out3 = pl.pallas_call(
        _fused_kernel,
        out_shape=jax.ShapeDtypeStruct((B, 1, NC_PAD), jnp.float32),
        grid=(B,),
        in_specs=[
            pl.BlockSpec((None, S, K_IN), lambda b: (b, 0, 0)),     # x, per image
            pl.BlockSpec((K_IN, CF),      lambda b: (0, 0)),        # w_feat (resident)
            pl.BlockSpec((None, T, CC),   lambda b: (b, 0, 0)),     # cams, per image
            pl.BlockSpec((S, T),          lambda b: (0, 0)),        # resize matrix (resident)
            pl.BlockSpec((CC, CF),        lambda b: (0, 0)),        # w2 * bn_scale (resident)
            pl.BlockSpec((CF, CF),        lambda b: (0, 0)),        # w1 * bn_scale (resident)
            pl.BlockSpec((1, CF),         lambda b: (0, 0)),        # folded bias/shift
            pl.BlockSpec((CF, NC_PAD),    lambda b: (0, 0)),        # classifier weight (padded, /S)
            pl.BlockSpec((1, NC_PAD),     lambda b: (0, 0)),        # classifier bias (padded)
        ],
        out_specs=pl.BlockSpec((None, 1, NC_PAD), lambda b: (b, 0, 0)),
        compiler_params=pltpu.CompilerParams(
            dimension_semantics=("parallel",)),                     # 2-TC sharding on v7x
    )(x3d, w_feat, cams3d, m, w2s, w1s, shift2, w_cls_p, b_cls_p)

    return out3[:, 0, :NUM_CLASSES]                                 # (B, NUM_CLASSES)


# ---------------- pure-JAX reference (NCHW, follows the PyTorch code, f32) ----
def reference(x, cams, p):
    x2d = (x.reshape(B, C_IN, HF, PATCH, WF, PATCH)
            .transpose(0, 2, 4, 1, 3, 5)
            .reshape(B * S, K_IN))
    feats = (x2d @ p["w_feat"]).reshape(B, HF, WF, CF).transpose(0, 3, 1, 2)  # NCHW

    a_mat = jnp.asarray(_A_MAT_NP)
    b_mat = jnp.asarray(_B_MAT_NP)
    t = jnp.einsum("hi,bciw->bchw", a_mat, cams)
    cams_rs = jnp.einsum("bchw,jw->bchj", t, b_mat)                # (B, CC, HF, WF)

    cat = jnp.concatenate([feats, cams_rs], axis=1)                # (B, CF+CC, HF, WF)
    w_cat = jnp.concatenate([p["w1"], p["w2"]], axis=0)            # (CF+CC, CF)
    y = jnp.einsum("bchw,ck->bkhw", cat, w_cat) + p["b_conv"].reshape(1, CF, 1, 1)

    scale = p["gamma"] / jnp.sqrt(p["r_var"] + BN_EPS)
    shift = p["beta"] - p["r_mean"] * scale
    y = jnp.maximum(y * scale.reshape(1, CF, 1, 1) + shift.reshape(1, CF, 1, 1), 0.0)

    pooled = y.mean(axis=(2, 3))                                   # (B, CF)
    return pooled @ p["w_cls"] + p["b_cls"]


if __name__ == "__main__":
    key = jax.random.PRNGKey(0)
    kx, kc = jax.random.split(key)
    x = jax.random.normal(kx, (B, C_IN, H, W), jnp.float32)        # NCHW like PyTorch
    cams = jax.random.normal(kc, (B, CC, HC, WC), jnp.float32)     # NCHW like PyTorch
    params = init_params(jax.random.PRNGKey(1))

    fwd = jax.jit(efficientnet_b4_with_elayer)
    out = jax.block_until_ready(fwd(x, cams, params))
    assert out.shape == (B, NUM_CLASSES)

    ref = jax.block_until_ready(reference(x, cams, params))
    # bf16 MXU operands (f32 accumulate) -> a few-percent-of-a-unit tolerance.
    assert jnp.allclose(out, ref, rtol=2e-2, atol=2e-2), (
        f"max abs diff {float(jnp.max(jnp.abs(out - ref)))}")

    print("KERNEL_OK")
</pallas_src>

<mosaic_0001>
module attributes {stable_mosaic.version = 11 : i64} {
  func.func @_fused_kernel(%arg0: i32, %arg1: memref<1x64x48xbf16, #tpu.memory_space<vmem>>, %arg2: memref<48x128xbf16, #tpu.memory_space<vmem>>, %arg3: memref<1x256x4xbf16, #tpu.memory_space<vmem>>, %arg4: memref<64x256xbf16, #tpu.memory_space<vmem>>, %arg5: memref<4x128xbf16, #tpu.memory_space<vmem>>, %arg6: memref<128x128xbf16, #tpu.memory_space<vmem>>, %arg7: memref<1x128xf32, #tpu.memory_space<vmem>>, %arg8: memref<128x128xf32, #tpu.memory_space<vmem>>, %arg9: memref<1x128xf32, #tpu.memory_space<vmem>>, %arg10: memref<1x1x128xf32, #tpu.memory_space<vmem>>) attributes {dimension_semantics = [#tpu.dimension_semantics<parallel>], iteration_bounds = array<i64: 2>, scalar_prefetch = 0 : i64, scratch_operands = 0 : i64, tpu.core_type = #tpu.core_type<tc>, window_params = [{transform_indices = @transform_0, window_bounds = array<i64: 1, 64, 48>}, {pipeline_mode = #tpu.pipeline_mode<synchronous>, transform_indices = @transform_1, window_bounds = array<i64: 48, 128>}, {transform_indices = @transform_2, window_bounds = array<i64: 1, 256, 4>}, {pipeline_mode = #tpu.pipeline_mode<synchronous>, transform_indices = @transform_3, window_bounds = array<i64: 64, 256>}, {pipeline_mode = #tpu.pipeline_mode<synchronous>, transform_indices = @transform_4, window_bounds = array<i64: 4, 128>}, {pipeline_mode = #tpu.pipeline_mode<synchronous>, transform_indices = @transform_5, window_bounds = array<i64: 128, 128>}, {pipeline_mode = #tpu.pipeline_mode<synchronous>, transform_indices = @transform_6, window_bounds = array<i64: 1, 128>}, {pipeline_mode = #tpu.pipeline_mode<synchronous>, transform_indices = @transform_7, window_bounds = array<i64: 128, 128>}, {pipeline_mode = #tpu.pipeline_mode<synchronous>, transform_indices = @transform_8, window_bounds = array<i64: 1, 128>}, {transform_indices = @transform_9, window_bounds = array<i64: 1, 1, 128>}]} {
    %c0 = arith.constant 0 : index
    %c0_0 = arith.constant 0 : index
    %c0_1 = arith.constant 0 : index
    %0 = vector.load %arg1[%c0, %c0_0, %c0_1] : memref<1x64x48xbf16, #tpu.memory_space<vmem>>, vector<1x64x48xbf16>
    %1 = vector.shape_cast %0 : vector<1x64x48xbf16> to vector<64x48xbf16>
    %c0_2 = arith.constant 0 : index
    %c0_3 = arith.constant 0 : index
    %2 = vector.load %arg2[%c0_2, %c0_3] : memref<48x128xbf16, #tpu.memory_space<vmem>>, vector<48x128xbf16>
    %cst = arith.constant dense<0.000000e+00> : vector<64x128xf32>
    %3 = tpu.matmul %1, %2, %cst {dimension_numbers = #tpu.dot_dimension_numbers<[1], [0], [0], [1], [0, 0, 1, 1], [], []>} : vector<64x48xbf16>, vector<48x128xbf16>, vector<64x128xf32> -> vector<64x128xf32>
    %c0_4 = arith.constant 0 : index
    %c0_5 = arith.constant 0 : index
    %4 = vector.load %arg4[%c0_4, %c0_5] : memref<64x256xbf16, #tpu.memory_space<vmem>>, vector<64x256xbf16>
    %c0_6 = arith.constant 0 : index
    %c0_7 = arith.constant 0 : index
    %c0_8 = arith.constant 0 : index
    %5 = vector.load %arg3[%c0_6, %c0_7, %c0_8] : memref<1x256x4xbf16, #tpu.memory_space<vmem>>, vector<1x256x4xbf16>
    %6 = vector.shape_cast %5 : vector<1x256x4xbf16> to vector<256x4xbf16>
    %cst_9 = arith.constant dense<0.000000e+00> : vector<64x4xf32>
    %7 = tpu.matmul %4, %6, %cst_9 {dimension_numbers = #tpu.dot_dimension_numbers<[1], [0], [0], [1], [0, 0, 1, 1], [], []>} : vector<64x256xbf16>, vector<256x4xbf16>, vector<64x4xf32> -> vector<64x4xf32>
    %8 = arith.truncf %7 : vector<64x4xf32> to vector<64x4xbf16>
    %c0_10 = arith.constant 0 : index
    %c0_11 = arith.constant 0 : index
    %9 = vector.load %arg5[%c0_10, %c0_11] : memref<4x128xbf16, #tpu.memory_space<vmem>>, vector<4x128xbf16>
    %cst_12 = arith.constant dense<0.000000e+00> : vector<64x128xf32>
    %10 = tpu.matmul %8, %9, %cst_12 {dimension_numbers = #tpu.dot_dimension_numbers<[1], [0], [0], [1], [0, 0, 1, 1], [], []>} : vector<64x4xbf16>, vector<4x128xbf16>, vector<64x128xf32> -> vector<64x128xf32>
    %11 = arith.truncf %3 : vector<64x128xf32> to vector<64x128xbf16>
    %c0_13 = arith.constant 0 : index
    %c0_14 = arith.constant 0 : index
    %12 = vector.load %arg6[%c0_13, %c0_14] : memref<128x128xbf16, #tpu.memory_space<vmem>>, vector<128x128xbf16>
    %cst_15 = arith.constant dense<0.000000e+00> : vector<64x128xf32>
    %13 = tpu.matmul %11, %12, %cst_15 {dimension_numbers = #tpu.dot_dimension_numbers<[1], [0], [0], [1], [0, 0, 1, 1], [], []>} : vector<64x128xbf16>, vector<128x128xbf16>, vector<64x128xf32> -> vector<64x128xf32>
    %14 = arith.addf %13, %10 : vector<64x128xf32>
    %c0_16 = arith.constant 0 : index
    %c0_17 = arith.constant 0 : index
    %15 = vector.load %arg7[%c0_16, %c0_17] : memref<1x128xf32, #tpu.memory_space<vmem>>, vector<1x128xf32>
    %16 = vector.broadcast %15 : vector<1x128xf32> to vector<64x128xf32>
    %17 = arith.addf %14, %16 : vector<64x128xf32>
    %cst_18 = arith.constant 0.000000e+00 : f32
    %18 = vector.broadcast %cst_18 : f32 to vector<64x128xf32>
    %19 = arith.maximumf %17, %18 : vector<64x128xf32>
    %cst_19 = arith.constant dense<0.000000e+00> : vector<128xf32>
    %20 = vector.multi_reduction <add>, %19, %cst_19 [0] : vector<64x128xf32> to vector<128xf32>
    %21 = vector.shape_cast %20 : vector<128xf32> to vector<1x128xf32>
    %c0_20 = arith.constant 0 : index
    %c0_21 = arith.constant 0 : index
    %22 = vector.load %arg8[%c0_20, %c0_21] : memref<128x128xf32, #tpu.memory_space<vmem>>, vector<128x128xf32>
    %cst_22 = arith.constant dense<0.000000e+00> : vector<1x128xf32>
    %23 = tpu.matmul %21, %22, %cst_22 {dimension_numbers = #tpu.dot_dimension_numbers<[1], [0], [0], [1], [0, 0, 1, 1], [], []>} : vector<1x128xf32>, vector<128x128xf32>, vector<1x128xf32> -> vector<1x128xf32>
    %c0_23 = arith.constant 0 : index
    %c0_24 = arith.constant 0 : index
    %24 = vector.load %arg9[%c0_23, %c0_24] : memref<1x128xf32, #tpu.memory_space<vmem>>, vector<1x128xf32>
    %25 = arith.addf %23, %24 : vector<1x128xf32>
    %c0_25 = arith.constant 0 : index
    %c0_26 = arith.constant 0 : index
    %c0_27 = arith.constant 0 : index
    %26 = vector.load %arg10[%c0_25, %c0_26, %c0_27] : memref<1x1x128xf32, #tpu.memory_space<vmem>>, vector<1x1x128xf32>
    %27 = vector.shape_cast %26 : vector<1x1x128xf32> to vector<1x128xf32>
    %28 = vector.shape_cast %25 : vector<1x128xf32> to vector<1x1x128xf32>
    tpu.vector_store %arg10[%c0_25, %c0_26, %c0_27], %28 {strides = array<i32>} : memref<1x1x128xf32, #tpu.memory_space<vmem>>, vector<1x1x128xf32>,
    return
  }
  func.func @transform_0(%arg0: i32) -> (i32, i32, i32) {
    %c0_i32 = arith.constant 0 : i32
    %c0_i32_0 = arith.constant 0 : i32
    %c0_i32_1 = arith.constant 0 : i32
    return %arg0, %c0_i32, %c0_i32_0 : i32, i32, i32
  }
  func.func @transform_1(%arg0: i32) -> (i32, i32) {
    %c0_i32 = arith.constant 0 : i32
    %c0_i32_0 = arith.constant 0 : i32
    %c0_i32_1 = arith.constant 0 : i32
    return %c0_i32, %c0_i32_0 : i32, i32
  }
  func.func @transform_2(%arg0: i32) -> (i32, i32, i32) {
    %c0_i32 = arith.constant 0 : i32
    %c0_i32_0 = arith.constant 0 : i32
    %c0_i32_1 = arith.constant 0 : i32
    return %arg0, %c0_i32, %c0_i32_0 : i32, i32, i32
  }
  func.func @transform_3(%arg0: i32) -> (i32, i32) {
    %c0_i32 = arith.constant 0 : i32
    %c0_i32_0 = arith.constant 0 : i32
    %c0_i32_1 = arith.constant 0 : i32
    return %c0_i32, %c0_i32_0 : i32, i32
  }
  func.func @transform_4(%arg0: i32) -> (i32, i32) {
    %c0_i32 = arith.constant 0 : i32
    %c0_i32_0 = arith.constant 0 : i32
    %c0_i32_1 = arith.constant 0 : i32
    return %c0_i32, %c0_i32_0 : i32, i32
  }
  func.func @transform_5(%arg0: i32) -> (i32, i32) {
    %c0_i32 = arith.constant 0 : i32
    %c0_i32_0 = arith.constant 0 : i32
    %c0_i32_1 = arith.constant 0 : i32
    return %c0_i32, %c0_i32_0 : i32, i32
  }
  func.func @transform_6(%arg0: i32) -> (i32, i32) {
    %c0_i32 = arith.constant 0 : i32
    %c0_i32_0 = arith.constant 0 : i32
    %c0_i32_1 = arith.constant 0 : i32
    return %c0_i32, %c0_i32_0 : i32, i32
  }
  func.func @transform_7(%arg0: i32) -> (i32, i32) {
    %c0_i32 = arith.constant 0 : i32
    %c0_i32_0 = arith.constant 0 : i32
    %c0_i32_1 = arith.constant 0 : i32
    return %c0_i32, %c0_i32_0 : i32, i32
  }
  func.func @transform_8(%arg0: i32) -> (i32, i32) {
    %c0_i32 = arith.constant 0 : i32
    %c0_i32_0 = arith.constant 0 : i32
    %c0_i32_1 = arith.constant 0 : i32
    return %c0_i32, %c0_i32_0 : i32, i32
  }
  func.func @transform_9(%arg0: i32) -> (i32, i32, i32) {
    %c0_i32 = arith.constant 0 : i32
    %c0_i32_0 = arith.constant 0 : i32
    %c0_i32_1 = arith.constant 0 : i32
    return %arg0, %c0_i32, %c0_i32_0 : i32, i32, i32
  }
}

</mosaic_0001>

<llo_original>
// kernel: efficientnet_b4_with_elayer.1
$region0: #{efficientnet_b4_with_elayer.1}
  #allocation0 [shape = 'u32[]', space=smem, size = 0x4, offset = 0x4, fixed_abs, tag = 'smem constant byte address 0x4 - core index']
  #allocation1 [shape = 'u32[144,128]{1,0:T(1,128)}', space=vmem, size = 0x12000, scoped, tag = 'internal scratch']
  %s0 = inlined_call_operand.vmem [shape: bf16[2,64,48], index: 0, kind: input, shape index: {}]
  %s1 = inlined_call_operand.vmem [shape: bf16[48,128], index: 1, kind: input, shape index: {}]
  %s2 = inlined_call_operand.vmem [shape: bf16[2,256,4], index: 2, kind: input, shape index: {}]
  %s3 = inlined_call_operand.vmem [shape: bf16[64,256], index: 3, kind: input, shape index: {}]
  %s4 = inlined_call_operand.vmem [shape: bf16[4,128], index: 4, kind: input, shape index: {}]
  %s5 = inlined_call_operand.vmem [shape: bf16[128,128], index: 5, kind: input, shape index: {}]
  %s6 = inlined_call_operand.vmem [shape: f32[1,128], index: 6, kind: input, shape index: {}]
  %s7 = inlined_call_operand.vmem [shape: f32[128,128], index: 7, kind: input, shape index: {}]
  %s8 = inlined_call_operand.vmem [shape: f32[1,128], index: 8, kind: input, shape index: {}]
  %s9 = inlined_call_operand.hbm [shape: f32[2,1,128], index: 9, kind: output, shape index: {}]
  %s10 = sld [smem:[#allocation0]]
  $region69: #{efficientnet_b4_with_elayer.1} parent=0
    _
  %s12 = ssub.s32 1, %s10
  %s13 = scalar_select 0, %s12, %s10
  $region1: #{efficientnet_b4_with_elayer.1} parent=0
    #allocation2 [shape = 'u8[1024]{0}', space=vmem, size = 0x400, scoped, tag = 'output window, operand 0']
    #allocation3 [shape = 's32[2]{0}', space=sflag, size = 0x8, scoped, tag = 'scoped memory for efficientnet_b4_with_elayer.1']
    %14 = vsyncpa [#allocation3], 0
    %s15 = scalar_lea.sflag [#allocation3], 1
    %16 = vsyncpa %s15, 0
    loop: start=0, step=1, limit=4
    $region2: #{efficientnet_b4_with_elayer.1} parent=1 // loop_pre_header
      _
    $region3: #{efficientnet_b4_with_elayer.1} parent=1 // loop_header
      %s18 = sphi 0, %s22
      %p19 = scmp.ge.s32.totalorder %s18, 4
      %s28 = sphi 0, %s30
      %s31 = sphi 0, %s28
      %s32 = sphi 0, %s31
      %s48 = sphi 0, %s32
      %s52 = sphi 0, %s52
      %s54 = sphi 0, %s52
      %s55 = sphi 0, %s54
      %s69 = sphi 0, %s55
      %s75 = sphi 0, %s77
      %s78 = sphi 0, %s75
      %s79 = sphi 0, %s78
      %s95 = sphi 0, %s79
      %s99 = sphi 0, %s99
      %s101 = sphi 0, %s99
      %s102 = sphi 0, %s101
      %s116 = sphi 0, %s102
      %s120 = sphi 0, %s120
      %s122 = sphi 0, %s120
      %s123 = sphi 0, %s122
      %s137 = sphi 0, %s123
      %s141 = sphi 0, %s141
      %s143 = sphi 0, %s141
      %s144 = sphi 0, %s143
      %s158 = sphi 0, %s144
      %s162 = sphi 0, %s162
      %s164 = sphi 0, %s162
      %s165 = sphi 0, %s164
      %s179 = sphi 0, %s165
      %s183 = sphi 0, %s183
      %s185 = sphi 0, %s183
      %s186 = sphi 0, %s185
      %s200 = sphi 0, %s186
      %s204 = sphi 0, %s204
      %s206 = sphi 0, %s204
      %s207 = sphi 0, %s206
      %s221 = sphi 0, %s207
      %s227 = sphi 0, %s229
      %s230 = sphi 0, %s227
      %s231 = sphi 0, %s230
      %s247 = sphi 0, %s231
    $region4: #{efficientnet_b4_with_elayer.1} parent=1 // loop_header_branch
      %21 = sbr.rel (%p19) target = $region8
    $region5: #{efficientnet_b4_with_elayer.1} parent=1 // loop_body
      %s23 = ssub.s32 %s18, 1
      %s24 = ssub.s32 %s18, 2
      %s25 = sadd.s32 %s18, 1
      %s26 = ssub.s32 %s18, %s25
      %p27 = scmp.eq.s32.totalorder %s26, 0
      %s29 = sadd.s32 %s28, 1
      %s30 = scalar_select %p27, %s28, %s29
      %p33 = pneg %p27
      %p34 = scmp.eq.s32.totalorder %s18, 1
      %p35 = por %p33, %p34
      %p36 = scmp.ne.s32.totalorder %s28, %s31
      %p37 = scmp.eq.s32.totalorder %s18, 0
      %p38 = por %p36, %p37
      %p39 = scmp.ne.s32.totalorder %s28, %s31
      %p40 = scmp.eq.s32.totalorder %s23, 1
      %p41 = por %p39, %p40
      %p42 = scmp.ne.s32.totalorder %s31, %s32
      %p43 = scmp.eq.s32.totalorder %s23, 0
      %p44 = por %p42, %p43
      %p45 = scmp.ne.s32.totalorder %s31, %s32
      %p46 = scmp.eq.s32.totalorder %s24, 1
      %p47 = por %p45, %p46
      %p49 = scmp.ne.s32.totalorder %s32, %s48
      %p50 = scmp.eq.s32.totalorder %s24, 0
      %p51 = por %p49, %p50
      %s53 = sadd.s32 %s52, 1
      %p56 = scmp.eq.s32.totalorder %s18, 1
      %p57 = scmp.ne.s32.totalorder %s52, %s54
      %p58 = scmp.eq.s32.totalorder %s18, 0
      %p59 = por %p57, %p58
      %p60 = scmp.ne.s32.totalorder %s52, %s54
      %p61 = scmp.eq.s32.totalorder %s23, 1
      %p62 = por %p60, %p61
      %p63 = scmp.ne.s32.totalorder %s54, %s55
      %p64 = scmp.eq.s32.totalorder %s23, 0
      %p65 = por %p63, %p64
      %p66 = scmp.ne.s32.totalorder %s54, %s55
      %p67 = scmp.eq.s32.totalorder %s24, 1
      %p68 = por %p66, %p67
      %p70 = scmp.ne.s32.totalorder %s55, %s69
      %p71 = scmp.eq.s32.totalorder %s24, 0
      %p72 = por %p70, %p71
      %s73 = ssub.s32 %s18, %s25
      %p74 = scmp.eq.s32.totalorder %s73, 0
      %s76 = sadd.s32 %s75, 1
      %s77 = scalar_select %p74, %s75, %s76
      %p80 = pneg %p74
      %p81 = scmp.eq.s32.totalorder %s18, 1
      %p82 = por %p80, %p81
      %p83 = scmp.ne.s32.totalorder %s75, %s78
      %p84 = scmp.eq.s32.totalorder %s18, 0
      %p85 = por %p83, %p84
      %p86 = scmp.ne.s32.totalorder %s75, %s78
      %p87 = scmp.eq.s32.totalorder %s23, 1
      %p88 = por %p86, %p87
      %p89 = scmp.ne.s32.totalorder %s78, %s79
      %p90 = scmp.eq.s32.totalorder %s23, 0
      %p91 = por %p89, %p90
      %p92 = scmp.ne.s32.totalorder %s78, %s79
      %p93 = scmp.eq.s32.totalorder %s24, 1
      %p94 = por %p92, %p93
      %p96 = scmp.ne.s32.totalorder %s79, %s95
      %p97 = scmp.eq.s32.totalorder %s24, 0
      %p98 = por %p96, %p97
      %s100 = sadd.s32 %s99, 1
      %p103 = scmp.eq.s32.totalorder %s18, 1
      %p104 = scmp.ne.s32.totalorder %s99, %s101
      %p105 = scmp.eq.s32.totalorder %s18, 0
      %p106 = por %p104, %p105
      %p107 = scmp.ne.s32.totalorder %s99, %s101
      %p108 = scmp.eq.s32.totalorder %s23, 1
      %p109 = por %p107, %p108
      %p110 = scmp.ne.s32.totalorder %s101, %s102
      %p111 = scmp.eq.s32.totalorder %s23, 0
      %p112 = por %p110, %p111
      %p113 = scmp.ne.s32.totalorder %s101, %s102
      %p114 = scmp.eq.s32.totalorder %s24, 1
      %p115 = por %p113, %p114
      %p117 = scmp.ne.s32.totalorder %s102, %s116
      %p118 = scmp.eq.s32.totalorder %s24, 0
      %p119 = por %p117, %p118
      %s121 = sadd.s32 %s120, 1
      %p124 = scmp.eq.s32.totalorder %s18, 1
      %p125 = scmp.ne.s32.totalorder %s120, %s122
      %p126 = scmp.eq.s32.totalorder %s18, 0
      %p127 = por %p125, %p126
      %p128 = scmp.ne.s32.totalorder %s120, %s122
      %p129 = scmp.eq.s32.totalorder %s23, 1
      %p130 = por %p128, %p129
      %p131 = scmp.ne.s32.totalorder %s122, %s123
      %p132 = scmp.eq.s32.totalorder %s23, 0
      %p133 = por %p131, %p132
      %p134 = scmp.ne.s32.totalorder %s122, %s123
      %p135 = scmp.eq.s32.totalorder %s24, 1
      %p136 = por %p134, %p135
      %p138 = scmp.ne.s32.totalorder %s123, %s137
      %p139 = scmp.eq.s32.totalorder %s24, 0
      %p140 = por %p138, %p139
      %s142 = sadd.s32 %s141, 1
      %p145 = scmp.eq.s32.totalorder %s18, 1
      %p146 = scmp.ne.s32.totalorder %s141, %s143
      %p147 = scmp.eq.s32.totalorder %s18, 0
      %p148 = por %p146, %p147
      %p149 = scmp.ne.s32.totalorder %s141, %s143
      %p150 = scmp.eq.s32.totalorder %s23, 1
      %p151 = por %p149, %p150
      %p152 = scmp.ne.s32.totalorder %s143, %s144
      %p153 = scmp.eq.s32.totalorder %s23, 0
      %p154 = por %p152, %p153
      %p155 = scmp.ne.s32.totalorder %s143, %s144
      %p156 = scmp.eq.s32.totalorder %s24, 1
      %p157 = por %p155, %p156
      %p159 = scmp.ne.s32.totalorder %s144, %s158
      %p160 = scmp.eq.s32.totalorder %s24, 0
      %p161 = por %p159, %p160
      %s163 = sadd.s32 %s162, 1
      %p166 = scmp.eq.s32.totalorder %s18, 1
      %p167 = scmp.ne.s32.totalorder %s162, %s164
      %p168 = scmp.eq.s32.totalorder %s18, 0
      %p169 = por %p167, %p168
      %p170 = scmp.ne.s32.totalorder %s162, %s164
      %p171 = scmp.eq.s32.totalorder %s23, 1
      %p172 = por %p170, %p171
      %p173 = scmp.ne.s32.totalorder %s164, %s165
      %p174 = scmp.eq.s32.totalorder %s23, 0
      %p175 = por %p173, %p174
      %p176 = scmp.ne.s32.totalorder %s164, %s165
      %p177 = scmp.eq.s32.totalorder %s24, 1
      %p178 = por %p176, %p177
      %p180 = scmp.ne.s32.totalorder %s165, %s179
      %p181 = scmp.eq.s32.totalorder %s24, 0
      %p182 = por %p180, %p181
      %s184 = sadd.s32 %s183, 1
      %p187 = scmp.eq.s32.totalorder %s18, 1
      %p188 = scmp.ne.s32.totalorder %s183, %s185
      %p189 = scmp.eq.s32.totalorder %s18, 0
      %p190 = por %p188, %p189
      %p191 = scmp.ne.s32.totalorder %s183, %s185
      %p192 = scmp.eq.s32.totalorder %s23, 1
      %p193 = por %p191, %p192
      %p194 = scmp.ne.s32.totalorder %s185, %s186
      %p195 = scmp.eq.s32.totalorder %s23, 0
      %p196 = por %p194, %p195
      %p197 = scmp.ne.s32.totalorder %s185, %s186
      %p198 = scmp.eq.s32.totalorder %s24, 1
      %p199 = por %p197, %p198
      %p201 = scmp.ne.s32.totalorder %s186, %s200
      %p202 = scmp.eq.s32.totalorder %s24, 0
      %p203 = por %p201, %p202
      %s205 = sadd.s32 %s204, 1
      %p208 = scmp.eq.s32.totalorder %s18, 1
      %p209 = scmp.ne.s32.totalorder %s204, %s206
      %p210 = scmp.eq.s32.totalorder %s18, 0
      %p211 = por %p209, %p210
      %p212 = scmp.ne.s32.totalorder %s204, %s206
      %p213 = scmp.eq.s32.totalorder %s23, 1
      %p214 = por %p212, %p213
      %p215 = scmp.ne.s32.totalorder %s206, %s207
      %p216 = scmp.eq.s32.totalorder %s23, 0
      %p217 = por %p215, %p216
      %p218 = scmp.ne.s32.totalorder %s206, %s207
      %p219 = scmp.eq.s32.totalorder %s24, 1
      %p220 = por %p218, %p219
      %p222 = scmp.ne.s32.totalorder %s207, %s221
      %p223 = scmp.eq.s32.totalorder %s24, 0
      %p224 = por %p222, %p223
      %s225 = ssub.s32 %s18, %s25
      %p226 = scmp.eq.s32.totalorder %s225, 0
      %s228 = sadd.s32 %s227, 1
      %s229 = scalar_select %p226, %s227, %s228
      %p232 = pneg %p226
      %p233 = scmp.eq.s32.totalorder %s18, 1
      %p234 = por %p232, %p233
      %p235 = scmp.ne.s32.totalorder %s227, %s230
      %p236 = scmp.eq.s32.totalorder %s18, 0
      %p237 = por %p235, %p236
      %p238 = scmp.ne.s32.totalorder %s227, %s230
      %p239 = scmp.eq.s32.totalorder %s23, 1
      %p240 = por %p238, %p239
      %p241 = scmp.ne.s32.totalorder %s230, %s231
      %p242 = scmp.eq.s32.totalorder %s23, 0
      %p243 = por %p241, %p242
      %p244 = scmp.ne.s32.totalorder %s230, %s231
      %p245 = scmp.eq.s32.totalorder %s24, 1
      %p246 = por %p244, %p245
      %p248 = scmp.ne.s32.totalorder %s231, %s247
      %p249 = scmp.eq.s32.totalorder %s24, 0
      %p250 = por %p248, %p249
      %p251 = scmp.le.s32.totalorder 1, %s18
      %p252 = scmp.lt.s32.totalorder %s18, 3
      %p253 = pnand %p251, %p252
      %p254 = pneg %p253
      // Predicated region
      $region9: #{efficientnet_b4_with_elayer.1} parent=5 // pred_check
        _
      $region10: #{efficientnet_b4_with_elayer.1} parent=5 // pred_check_branch
        %256 = sbr.rel (%p253) target = $region12
      $region11: #{efficientnet_b4_with_elayer.1} parent=5 // pred_region
        %s257 = ssub.s32 %s18, 1
        // Predicated region
        $region13: #{efficientnet_b4_with_elayer.1} parent=11 // pred_check
          %p258 = pneg %p65
        $region14: #{efficientnet_b4_with_elayer.1} parent=11 // pred_check_branch
          %260 = sbr.rel (%p258) target = $region16
        $region15: #{efficientnet_b4_with_elayer.1} parent=11 // pred_region
          _
        $region16: #{efficientnet_b4_with_elayer.1} parent=11 // pred_fallthru
          _
        // Predicated region
        $region17: #{efficientnet_b4_with_elayer.1} parent=11 // pred_check
          %p261 = pneg %p112
        $region18: #{efficientnet_b4_with_elayer.1} parent=11 // pred_check_branch
          %263 = sbr.rel (%p261) target = $region20
        $region19: #{efficientnet_b4_with_elayer.1} parent=11 // pred_region
          _
        $region20: #{efficientnet_b4_with_elayer.1} parent=11 // pred_fallthru
          _
        // Predicated region
        $region21: #{efficientnet_b4_with_elayer.1} parent=11 // pred_check
          %p264 = pneg %p133
        $region22: #{efficientnet_b4_with_elayer.1} parent=11 // pred_check_branch
          %266 = sbr.rel (%p264) target = $region24
        $region23: #{efficientnet_b4_with_elayer.1} parent=11 // pred_region
          _
        $region24: #{efficientnet_b4_with_elayer.1} parent=11 // pred_fallthru
          _
        // Predicated region
        $region25: #{efficientnet_b4_with_elayer.1} parent=11 // pred_check
          %p267 = pneg %p154
        $region26: #{efficientnet_b4_with_elayer.1} parent=11 // pred_check_branch
          %269 = sbr.rel (%p267) target = $region28
        $region27: #{efficientnet_b4_with_elayer.1} parent=11 // pred_region
          _
        $region28: #{efficientnet_b4_with_elayer.1} parent=11 // pred_fallthru
          _
        // Predicated region
        $region29: #{efficientnet_b4_with_elayer.1} parent=11 // pred_check
          %p270 = pneg %p175
        $region30: #{efficientnet_b4_with_elayer.1} parent=11 // pred_check_branch
          %272 = sbr.rel (%p270) target = $region32
        $region31: #{efficientnet_b4_with_elayer.1} parent=11 // pred_region
          _
        $region32: #{efficientnet_b4_with_elayer.1} parent=11 // pred_fallthru
          _
        // Predicated region
        $region33: #{efficientnet_b4_with_elayer.1} parent=11 // pred_check
          %p273 = pneg %p196
        $region34: #{efficientnet_b4_with_elayer.1} parent=11 // pred_check_branch
          %275 = sbr.rel (%p273) target = $region36
        $region35: #{efficientnet_b4_with_elayer.1} parent=11 // pred_region
          _
        $region36: #{efficientnet_b4_with_elayer.1} parent=11 // pred_fallthru
          _
        // Predicated region
        $region37: #{efficientnet_b4_with_elayer.1} parent=11 // pred_check
          %p276 = pneg %p217
        $region38: #{efficientnet_b4_with_elayer.1} parent=11 // pred_check_branch
          %278 = sbr.rel (%p276) target = $region40
        $region39: #{efficientnet_b4_with_elayer.1} parent=11 // pred_region
          _
        $region40: #{efficientnet_b4_with_elayer.1} parent=11 // pred_fallthru
          _
      $region12: #{efficientnet_b4_with_elayer.1} parent=5 // pred_fallthru
        _
      %p279 = scmp.lt.s32.totalorder %s18, 2
      // Predicated region
      $region41: #{efficientnet_b4_with_elayer.1} parent=5 // pred_check
        %p280 = pneg %p279
      $region42: #{efficientnet_b4_with_elayer.1} parent=5 // pred_check_branch
        %282 = sbr.rel (%p280) target = $region44
      $region43: #{efficientnet_b4_with_elayer.1} parent=5 // pred_region
        // Predicated region
        $region45: #{efficientnet_b4_with_elayer.1} parent=43 // pred_check
          %p283 = pneg %p38
        $region46: #{efficientnet_b4_with_elayer.1} parent=43 // pred_check_branch
          %285 = sbr.rel (%p283) target = $region48
        $region47: #{efficientnet_b4_with_elayer.1} parent=43 // pred_region
          %p286 = scmp.lt.s32.totalorder %s18, 1
          %s287 = scalar_select %p286, %s18, 1
          %s288 = smul.addr %s287, 8
          %s289 = smul.addr %s288, 4
          %s290 = scalar_lea.vmem %s0, %s289
        $region48: #{efficientnet_b4_with_elayer.1} parent=43 // pred_fallthru
          _
        // Predicated region
        $region49: #{efficientnet_b4_with_elayer.1} parent=43 // pred_check
          %p291 = pneg %p85
        $region50: #{efficientnet_b4_with_elayer.1} parent=43 // pred_check_branch
          %293 = sbr.rel (%p291) target = $region52
        $region51: #{efficientnet_b4_with_elayer.1} parent=43 // pred_region
          %p294 = scmp.lt.s32.totalorder %s18, 1
          %s295 = scalar_select %p294, %s18, 1
          %s296 = smul.addr %s295, 32
          %s297 = smul.addr %s296, 4
          %s298 = scalar_lea.vmem %s2, %s297
        $region52: #{efficientnet_b4_with_elayer.1} parent=43 // pred_fallthru
          _
      $region44: #{efficientnet_b4_with_elayer.1} parent=5 // pred_fallthru
        _
      %p299 = scmp.le.s32.totalorder 1, %s18
      %p300 = scmp.lt.s32.totalorder %s18, 3
      %p301 = pnand %p299, %p300
      %p302 = pneg %p301
      // Predicated region
      $region53: #{efficientnet_b4_with_elayer.1} parent=5 // pred_check
        _
      $region54: #{efficientnet_b4_with_elayer.1} parent=5 // pred_check_branch
        %304 = sbr.rel (%p301) target = $region56
      $region55: #{efficientnet_b4_with_elayer.1} parent=5 // pred_region
        %s305 = ssub.s32 %s18, 1
        %p306 = scmp.lt.s32.totalorder %s23, 1
        %s307 = scalar_select %p306, %s23, 1
        %s308 = smul.addr %s307, 8
        %s309 = smul.addr %s308, 4
        %s310 = scalar_lea.vmem %s0, %s309
        %p311 = pneg %p44
        %p312 = pneg %p41
        %p313 = pneg %p65
        %p314 = pneg %p62
        %p315 = scmp.lt.s32.totalorder %s23, 1
        %s316 = scalar_select %p315, %s23, 1
        %s317 = smul.addr %s316, 32
        %s318 = smul.addr %s317, 4
        %s319 = scalar_lea.vmem %s2, %s318
        %p320 = pneg %p91
        %p321 = pneg %p88
        %p322 = pneg %p112
        %p323 = pneg %p109
        %p324 = pneg %p133
        %p325 = pneg %p130
        %p326 = pneg %p154
        %p327 = pneg %p151
        %p328 = pneg %p175
        %p329 = pneg %p172
        %p330 = pneg %p196
        %p331 = pneg %p193
        %p332 = pneg %p217
        %p333 = pneg %p214
        %p334 = pneg %p243
        %p335 = pneg %p240
        %s336 = sand.u32 %s230, 1
        %s337 = scalar_lea.sflag [#allocation3], %s336
        %s338 = sand.u32 %s230, 1
        %s339 = scalar_lea.vmem [#allocation2], %s338
        %p340 = scmp.lt.s32.totalorder %s23, 1
        %s341 = scalar_select %p340, %s23, 1
        %s342 = smul.addr %s341, 8
        %s343 = smul.addr %s342, 4
        %s344 = scalar_lea.vmem %s0, %s343
        %p345 = scmp.lt.s32.totalorder %s23, 1
        %s346 = scalar_select %p345, %s23, 1
        %s347 = smul.addr %s346, 32
        %s348 = smul.addr %s347, 4
        %s349 = scalar_lea.vmem %s2, %s348
        %v351 = vld [vmem:[%s344] sm:$0xf]
        %v352 = vld [vmem:[%s344 + $0x4] sm:$0xf]
        %v353 = vld [vmem:[%s344 + $0x8] sm:$0xf]
        %v354 = vld [vmem:[%s344 + $0xc] sm:$0xf]
        %v355 = vld [vmem:[%s344 + $0x10] sm:$0xf]
        %v356 = vld [vmem:[%s344 + $0x14] sm:$0xf]
        %v357 = vld [vmem:[%s344 + $0x18] sm:$0xf]
        %v358 = vld [vmem:[%s344 + $0x1c] sm:$0xf]
        %v359 = vld [vmem:[%s1] sm:$0xf]
        %v360 = vld [vmem:[%s1 + $0x4] sm:$0xf]
        %v361 = vld [vmem:[%s1 + $0x8] sm:$0xf]
        %v362 = vld [vmem:[%s1 + $0xc] sm:$0xf]
        %v363 = vld [vmem:[%s1 + $0x10] sm:$0xf]
        %v364 = vld [vmem:[%s1 + $0x14] sm:$0xf]
        %v373 = vunpack.c.l.b16 %v351
        %v374 = vunpack.c.l.b16 %v352
        %v375 = vunpack.c.l.b16 %v353
        %v376 = vunpack.c.l.b16 %v354
        %v377 = vunpack.c.l.b16 %v355
        %v378 = vunpack.c.l.b16 %v356
        %v379 = vunpack.c.l.b16 %v357
        %v380 = vunpack.c.l.b16 %v358
        %v381 = vpack.c.b16 %v374, %v373
        %v382 = vpack.c.b16 %v376, %v375
        %v383 = vpack.c.b16 %v378, %v377
        %v384 = vpack.c.b16 %v380, %v379
        %v391 = vunpack.c.l.b16 %v359
        %v392 = vunpack.c.l.b16 %v360
        %v393 = vunpack.c.l.b16 %v361
        %v394 = vunpack.c.l.b16 %v362
        %v395 = vunpack.c.l.b16 %v363
        %v396 = vunpack.c.l.b16 %v364
        %v397 = vpack.c.b16 %v392, %v391
        %v398 = vpack.c.b16 %v394, %v393
        %v399 = vpack.c.b16 %v396, %v395
        %vm403 = vcmask 392192
        %v405 = vsel %vm403, %v381, 0
        %v408 = vsel %vm403, %v382, 0
        %v411 = vsel %vm403, %v383, 0
        %v414 = vsel %vm403, %v384, 0
        %416 = vmatprep.subr.bf16.mxu0 0
        %417 = vmatpush1.bf16.msra.mxu0 %v397
        %418 = vmatprep.subr.bf16.mxu0 0
        %419 = vmatpush1.bf16.msra.mxu0 %v398
        %420 = vmatprep.subr.bf16.mxu0 0
        %421 = vmatpush1.bf16.msra.mxu0 %v399
        %422 = vmatprep.subr.bf16.mxu0 0
        %423 = vmatpush1.bf16.msra.mxu0 0
        %424 = vmatprep.subr.bf16.mxu0 0
        %425 = vmatpush1.bf16.msra.mxu0 0
        %426 = vmatprep.subr.bf16.mxu0 0
        %427 = vmatpush1.bf16.msra.mxu0 0
        %428 = vmatprep.subr.bf16.mxu0 0
        %429 = vmatpush1.bf16.msra.mxu0 0
        %430 = vmatprep.subr.bf16.mxu0 0
        %431 = vmatpush1.bf16.msra.mxu0 0
        %432 = vmatprep.subr.bf16.mxu0 0
        %433 = vmatpush1.bf16.msra.mxu0 0
        %434 = vmatprep.subr.bf16.mxu0 0
        %435 = vmatpush1.bf16.msra.mxu0 0
        %436 = vmatprep.subr.bf16.mxu0 0
        %437 = vmatpush1.bf16.msra.mxu0 0
        %438 = vmatprep.subr.bf16.mxu0 0
        %439 = vmatpush1.bf16.msra.mxu0 0
        %440 = vmatprep.subr.bf16.mxu0 0
        %441 = vmatpush1.bf16.msra.mxu0 0
        %442 = vmatprep.subr.bf16.mxu0 0
        %443 = vmatpush1.bf16.msra.mxu0 0
        %444 = vmatprep.subr.bf16.mxu0 0
        %445 = vmatpush1.bf16.msra.mxu0 0
        %446 = vmatprep.subr.bf16.mxu0 0
        %447 = vmatpush1.bf16.msra.mxu0 0
        %448 = vmatprep.mubr.bf16.mxu0 0
        %449 = vmatmul.mubr.bf16.gmra.mrb[0].mxu0 %v405
        %v450 = vpop.f32.mrb[0].mxu0
        %v451 = vadd.f32 0.0, %v450
        %v452 = vpop.f32.mrb[0].mxu0
        %v453 = vpop.f32.mrb[0].mxu0
        %v454 = vadd.f32 0.0, %v453
        %v455 = vpop.f32.mrb[0].mxu0
        %456 = vmatprep.mubr.bf16.mxu0 0
        %457 = vmatmul.mubr.bf16.gmra.mrb[0].mxu0 %v408
        %v458 = vpop.f32.mrb[0].mxu0
        %v459 = vadd.f32 0.0, %v458
        %v460 = vpop.f32.mrb[0].mxu0
        %v461 = vpop.f32.mrb[0].mxu0
        %v462 = vadd.f32 0.0, %v461
        %v463 = vpop.f32.mrb[0].mxu0
        %464 = vmatprep.mubr.bf16.mxu0 0
        %465 = vmatmul.mubr.bf16.gmra.mrb[0].mxu0 %v411
        %v466 = vpop.f32.mrb[0].mxu0
        %v467 = vadd.f32 0.0, %v466
        %v468 = vpop.f32.mrb[0].mxu0
        %v469 = vpop.f32.mrb[0].mxu0
        %v470 = vadd.f32 0.0, %v469
        %v471 = vpop.f32.mrb[0].mxu0
        %472 = vmatprep.mubr.bf16.mxu0 0
        %473 = vmatmul.mubr.bf16.gmra.mrb[0].mxu0 %v414
        %v474 = vpop.f32.mrb[0].mxu0
        %v475 = vadd.f32 0.0, %v474
        %v476 = vpop.f32.mrb[0].mxu0
        %v477 = vpop.f32.mrb[0].mxu0
        %v478 = vadd.f32 0.0, %v477
        %v479 = vpop.f32.mrb[0].mxu0
        %480 = vdwg.mxu0
        %v481 = vld [vmem:[%s3] sm:$0xff]
        %v482 = vld [vmem:[%s3 + $0x8] sm:$0xff]
        %v483 = vld [vmem:[%s3 + $0x10] sm:$0xff]
        %v484 = vld [vmem:[%s3 + $0x18] sm:$0xff]
        %v485 = vld [vmem:[%s3 + $0x20] sm:$0xff]
        %v486 = vld [vmem:[%s3 + $0x28] sm:$0xff]
        %v487 = vld [vmem:[%s3 + $0x30] sm:$0xff]
        %v488 = vld [vmem:[%s3 + $0x38] sm:$0xff]
        %v489 = vld [vmem:[%s349] sm:$0xf]
        %v490 = vld [vmem:[%s349 + $0x4] sm:$0xf]
        %v491 = vld [vmem:[%s349 + $0x8] sm:$0xf]
        %v492 = vld [vmem:[%s349 + $0xc] sm:$0xf]
        %v493 = vld [vmem:[%s349 + $0x10] sm:$0xf]
        %v494 = vld [vmem:[%s349 + $0x14] sm:$0xf]
        %v495 = vld [vmem:[%s349 + $0x18] sm:$0xf]
        %v496 = vld [vmem:[%s349 + $0x1c] sm:$0xf]
        %v497 = vld [vmem:[%s349 + $0x20] sm:$0xf]
        %v498 = vld [vmem:[%s349 + $0x24] sm:$0xf]
        %v499 = vld [vmem:[%s349 + $0x28] sm:$0xf]
        %v500 = vld [vmem:[%s349 + $0x2c] sm:$0xf]
        %v501 = vld [vmem:[%s349 + $0x30] sm:$0xf]
        %v502 = vld [vmem:[%s349 + $0x34] sm:$0xf]
        %v503 = vld [vmem:[%s349 + $0x38] sm:$0xf]
        %v504 = vld [vmem:[%s349 + $0x3c] sm:$0xf]
        %v505 = vld [vmem:[%s349 + $0x40] sm:$0xf]
        %v506 = vld [vmem:[%s349 + $0x44] sm:$0xf]
        %v507 = vld [vmem:[%s349 + $0x48] sm:$0xf]
        %v508 = vld [vmem:[%s349 + $0x4c] sm:$0xf]
        %v509 = vld [vmem:[%s349 + $0x50] sm:$0xf]
        %v510 = vld [vmem:[%s349 + $0x54] sm:$0xf]
        %v511 = vld [vmem:[%s349 + $0x58] sm:$0xf]
        %v512 = vld [vmem:[%s349 + $0x5c] sm:$0xf]
        %v513 = vld [vmem:[%s349 + $0x60] sm:$0xf]
        %v514 = vld [vmem:[%s349 + $0x64] sm:$0xf]
        %v515 = vld [vmem:[%s349 + $0x68] sm:$0xf]
        %v516 = vld [vmem:[%s349 + $0x6c] sm:$0xf]
        %v517 = vld [vmem:[%s349 + $0x70] sm:$0xf]
        %v518 = vld [vmem:[%s349 + $0x74] sm:$0xf]
        %v519 = vld [vmem:[%s349 + $0x78] sm:$0xf]
        %v520 = vld [vmem:[%s349 + $0x7c] sm:$0xf]
        %v529 = vunpack.c.l.b16 %v481
        %v530 = vunpack.c.h.b16 %v481
        %v531 = vunpack.c.l.b16 %v482
        %v532 = vunpack.c.h.b16 %v482
        %v533 = vunpack.c.l.b16 %v483
        %v534 = vunpack.c.h.b16 %v483
        %v535 = vunpack.c.l.b16 %v484
        %v536 = vunpack.c.h.b16 %v484
        %v537 = vunpack.c.l.b16 %v485
        %v538 = vunpack.c.h.b16 %v485
        %v539 = vunpack.c.l.b16 %v486
        %v540 = vunpack.c.h.b16 %v486
        %v541 = vunpack.c.l.b16 %v487
        %v542 = vunpack.c.h.b16 %v487
        %v543 = vunpack.c.l.b16 %v488
        %v544 = vunpack.c.h.b16 %v488
        %v545 = vpack.c.b16 %v531, %v529
        %v546 = vpack.c.b16 %v532, %v530
        %v547 = vpack.c.b16 %v535, %v533
        %v548 = vpack.c.b16 %v536, %v534
        %v549 = vpack.c.b16 %v539, %v537
        %v550 = vpack.c.b16 %v540, %v538
        %v551 = vpack.c.b16 %v543, %v541
        %v552 = vpack.c.b16 %v544, %v542
        %v593 = vunpack.c.l.b16 %v489
        %v594 = vunpack.c.l.b16 %v490
        %v595 = vunpack.c.l.b16 %v491
        %v596 = vunpack.c.l.b16 %v492
        %v597 = vunpack.c.l.b16 %v493
        %v598 = vunpack.c.l.b16 %v494
        %v599 = vunpack.c.l.b16 %v495
        %v600 = vunpack.c.l.b16 %v496
        %v601 = vunpack.c.l.b16 %v497
        %v602 = vunpack.c.l.b16 %v498
        %v603 = vunpack.c.l.b16 %v499
        %v604 = vunpack.c.l.b16 %v500
        %v605 = vunpack.c.l.b16 %v501
        %v606 = vunpack.c.l.b16 %v502
        %v607 = vunpack.c.l.b16 %v503
        %v608 = vunpack.c.l.b16 %v504
        %v609 = vunpack.c.l.b16 %v505
        %v610 = vunpack.c.l.b16 %v506
        %v611 = vunpack.c.l.b16 %v507
        %v612 = vunpack.c.l.b16 %v508
        %v613 = vunpack.c.l.b16 %v509
        %v614 = vunpack.c.l.b16 %v510
        %v615 = vunpack.c.l.b16 %v511
        %v616 = vunpack.c.l.b16 %v512
        %v617 = vunpack.c.l.b16 %v513
        %v618 = vunpack.c.l.b16 %v514
        %v619 = vunpack.c.l.b16 %v515
        %v620 = vunpack.c.l.b16 %v516
        %v621 = vunpack.c.l.b16 %v517
        %v622 = vunpack.c.l.b16 %v518
        %v623 = vunpack.c.l.b16 %v519
        %v624 = vunpack.c.l.b16 %v520
        %v625 = vpack.c.b16 %v594, %v593
        %v626 = vpack.c.b16 %v596, %v595
        %v627 = vpack.c.b16 %v598, %v597
        %v628 = vpack.c.b16 %v600, %v599
        %v629 = vpack.c.b16 %v602, %v601
        %v630 = vpack.c.b16 %v604, %v603
        %v631 = vpack.c.b16 %v606, %v605
        %v632 = vpack.c.b16 %v608, %v607
        %v633 = vpack.c.b16 %v610, %v609
        %v634 = vpack.c.b16 %v612, %v611
        %v635 = vpack.c.b16 %v614, %v613
        %v636 = vpack.c.b16 %v616, %v615
        %v637 = vpack.c.b16 %v618, %v617
        %v638 = vpack.c.b16 %v620, %v619
        %v639 = vpack.c.b16 %v622, %v621
        %v640 = vpack.c.b16 %v624, %v623
        %657 = vmatprep.subr.bf16.mxu0 0
        %658 = vmatpush1.bf16.msra.mxu0 %v625
        %659 = vmatprep.subr.bf16.mxu0 0
        %660 = vmatpush1.bf16.msra.mxu0 %v626
        %661 = vmatprep.subr.bf16.mxu0 0
        %662 = vmatpush1.bf16.msra.mxu0 %v627
        %663 = vmatprep.subr.bf16.mxu0 0
        %664 = vmatpush1.bf16.msra.mxu0 %v628
        %665 = vmatprep.subr.bf16.mxu0 0
        %666 = vmatpush1.bf16.msra.mxu0 %v629
        %667 = vmatprep.subr.bf16.mxu0 0
        %668 = vmatpush1.bf16.msra.mxu0 %v630
        %669 = vmatprep.subr.bf16.mxu0 0
        %670 = vmatpush1.bf16.msra.mxu0 %v631
        %671 = vmatprep.subr.bf16.mxu0 0
        %672 = vmatpush1.bf16.msra.mxu0 %v632
        %673 = vmatprep.subr.bf16.mxu0 0
        %674 = vmatpush1.bf16.msra.mxu0 %v633
        %675 = vmatprep.subr.bf16.mxu0 0
        %676 = vmatpush1.bf16.msra.mxu0 %v634
        %677 = vmatprep.subr.bf16.mxu0 0
        %678 = vmatpush1.bf16.msra.mxu0 %v635
        %679 = vmatprep.subr.bf16.mxu0 0
        %680 = vmatpush1.bf16.msra.mxu0 %v636
        %681 = vmatprep.subr.bf16.mxu0 0
        %682 = vmatpush1.bf16.msra.mxu0 %v637
        %683 = vmatprep.subr.bf16.mxu0 0
        %684 = vmatpush1.bf16.msra.mxu0 %v638
        %685 = vmatprep.subr.bf16.mxu0 0
        %686 = vmatpush1.bf16.msra.mxu0 %v639
        %687 = vmatprep.subr.bf16.mxu0 0
        %688 = vmatpush1.bf16.msra.mxu0 %v640
        %689 = vmatprep.mubr.bf16.mxu0 %v546
        %690 = vmatmul.mubr.bf16.gmra.mrb[0].mxu0 %v545
        %v691 = vpop.f32.mrb[0].mxu0
        %v692 = vadd.f32 0.0, %v691
        %v693 = vpop.f32.mrb[0].mxu0
        %v694 = vpop.f32.mrb[0].mxu0
        %v695 = vadd.f32 0.0, %v694
        %v696 = vpop.f32.mrb[0].mxu0
        %697 = vmatprep.mubr.bf16.mxu0 %v548
        %698 = vmatmul.mubr.bf16.gmra.mrb[0].mxu0 %v547
        %v699 = vpop.f32.mrb[0].mxu0
        %v700 = vadd.f32 0.0, %v699
        %v701 = vpop.f32.mrb[0].mxu0
        %v702 = vpop.f32.mrb[0].mxu0
        %v703 = vadd.f32 0.0, %v702
        %v704 = vpop.f32.mrb[0].mxu0
        %705 = vmatprep.mubr.bf16.mxu0 %v550
        %706 = vmatmul.mubr.bf16.gmra.mrb[0].mxu0 %v549
        %v707 = vpop.f32.mrb[0].mxu0
        %v708 = vadd.f32 0.0, %v707
        %v709 = vpop.f32.mrb[0].mxu0
        %v710 = vpop.f32.mrb[0].mxu0
        %v711 = vadd.f32 0.0, %v710
        %v712 = vpop.f32.mrb[0].mxu0
        %713 = vmatprep.mubr.bf16.mxu0 %v552
        %714 = vmatmul.mubr.bf16.gmra.mrb[0].mxu0 %v551
        %v715 = vpop.f32.mrb[0].mxu0
        %v716 = vadd.f32 0.0, %v715
        %v717 = vpop.f32.mrb[0].mxu0
        %v718 = vpop.f32.mrb[0].mxu0
        %v719 = vadd.f32 0.0, %v718
        %v720 = vpop.f32.mrb[0].mxu0
        %721 = vdwg.mxu0
        %v722 = vpack.c.bf16 %v695, %v692
        %v723 = vpack.c.bf16 %v703, %v700
        %v724 = vpack.c.bf16 %v711, %v708
        %v725 = vpack.c.bf16 %v719, %v716
        %v726 = vld [vmem:[%s4] sm:$0x3]
        %vm727 = vcmask 31744
        %v729 = vsel %vm727, %v722, 0
        %v732 = vsel %vm727, %v723, 0
        %v735 = vsel %vm727, %v724, 0
        %v738 = vsel %vm727, %v725, 0
        %vm740 = vcmask 1041408
        %v742 = vsel %vm740, %v726, 0
        %744 = vmatprep.subr.bf16.mxu0 0
        %745 = vmatpush1.bf16.msra.mxu0 %v742
        %746 = vmatprep.subr.bf16.mxu0 0
        %747 = vmatpush1.bf16.msra.mxu0 0
        %748 = vmatprep.subr.bf16.mxu0 0
        %749 = vmatpush1.bf16.msra.mxu0 0
        %750 = vmatprep.subr.bf16.mxu0 0
        %751 = vmatpush1.bf16.msra.mxu0 0
        %752 = vmatprep.subr.bf16.mxu0 0
        %753 = vmatpush1.bf16.msra.mxu0 0
        %754 = vmatprep.subr.bf16.mxu0 0
        %755 = vmatpush1.bf16.msra.mxu0 0
        %756 = vmatprep.subr.bf16.mxu0 0
        %757 = vmatpush1.bf16.msra.mxu0 0
        %758 = vmatprep.subr.bf16.mxu0 0
        %759 = vmatpush1.bf16.msra.mxu0 0
        %760 = vmatprep.subr.bf16.mxu0 0
        %761 = vmatpush1.bf16.msra.mxu0 0
        %762 = vmatprep.subr.bf16.mxu0 0
        %763 = vmatpush1.bf16.msra.mxu0 0
        %764 = vmatprep.subr.bf16.mxu0 0
        %765 = vmatpush1.bf16.msra.mxu0 0
        %766 = vmatprep.subr.bf16.mxu0 0
        %767 = vmatpush1.bf16.msra.mxu0 0
        %768 = vmatprep.subr.bf16.mxu0 0
        %769 = vmatpush1.bf16.msra.mxu0 0
        %770 = vmatprep.subr.bf16.mxu0 0
        %771 = vmatpush1.bf16.msra.mxu0 0
        %772 = vmatprep.subr.bf16.mxu0 0
        %773 = vmatpush1.bf16.msra.mxu0 0
        %774 = vmatprep.subr.bf16.mxu0 0
        %775 = vmatpush1.bf16.msra.mxu0 0
        %776 = vmatprep.mubr.bf16.mxu0 0
        %777 = vmatmul.mubr.bf16.gmra.mrb[0].mxu0 %v729
        %v778 = vpop.f32.mrb[0].mxu0
        %v779 = vadd.f32 0.0, %v778
        %v780 = vpop.f32.mrb[0].mxu0
        %v781 = vpop.f32.mrb[0].mxu0
        %v782 = vadd.f32 0.0, %v781
        %v783 = vpop.f32.mrb[0].mxu0
        %784 = vmatprep.mubr.bf16.mxu0 0
        %785 = vmatmul.mubr.bf16.gmra.mrb[0].mxu0 %v732
        %v786 = vpop.f32.mrb[0].mxu0
        %v787 = vadd.f32 0.0, %v786
        %v788 = vpop.f32.mrb[0].mxu0
        %v789 = vpop.f32.mrb[0].mxu0
        %v790 = vadd.f32 0.0, %v789
        %v791 = vpop.f32.mrb[0].mxu0
        %792 = vmatprep.mubr.bf16.mxu0 0
        %793 = vmatmul.mubr.bf16.gmra.mrb[0].mxu0 %v735
        %v794 = vpop.f32.mrb[0].mxu0
        %v795 = vadd.f32 0.0, %v794
        %v796 = vpop.f32.mrb[0].mxu0
        %v797 = vpop.f32.mrb[0].mxu0
        %v798 = vadd.f32 0.0, %v797
        %v799 = vpop.f32.mrb[0].mxu0
        %800 = vmatprep.mubr.bf16.mxu0 0
        %801 = vmatmul.mubr.bf16.gmra.mrb[0].mxu0 %v738
        %v802 = vpop.f32.mrb[0].mxu0
        %v803 = vadd.f32 0.0, %v802
        %v804 = vpop.f32.mrb[0].mxu0
        %v805 = vpop.f32.mrb[0].mxu0
        %v806 = vadd.f32 0.0, %v805
        %v807 = vpop.f32.mrb[0].mxu0
        %808 = vdwg.mxu0
        %v809 = vpack.c.bf16 %v454, %v451
        %v810 = vpack.c.bf16 %v462, %v459
        %v811 = vpack.c.bf16 %v470, %v467
        %v812 = vpack.c.bf16 %v478, %v475
        %v813 = vld [vmem:[%s5] sm:$0xf]
        %v814 = vld [vmem:[%s5 + $0x4] sm:$0xf]
        %v815 = vld [vmem:[%s5 + $0x8] sm:$0xf]
        %v816 = vld [vmem:[%s5 + $0xc] sm:$0xf]
        %v817 = vld [vmem:[%s5 + $0x10] sm:$0xf]
        %v818 = vld [vmem:[%s5 + $0x14] sm:$0xf]
        %v819 = vld [vmem:[%s5 + $0x18] sm:$0xf]
        %v820 = vld [vmem:[%s5 + $0x1c] sm:$0xf]
        %v821 = vld [vmem:[%s5 + $0x20] sm:$0xf]
        %v822 = vld [vmem:[%s5 + $0x24] sm:$0xf]
        %v823 = vld [vmem:[%s5 + $0x28] sm:$0xf]
        %v824 = vld [vmem:[%s5 + $0x2c] sm:$0xf]
        %v825 = vld [vmem:[%s5 + $0x30] sm:$0xf]
        %v826 = vld [vmem:[%s5 + $0x34] sm:$0xf]
        %v827 = vld [vmem:[%s5 + $0x38] sm:$0xf]
        %v828 = vld [vmem:[%s5 + $0x3c] sm:$0xf]
        %v845 = vunpack.c.l.b16 %v813
        %v846 = vunpack.c.l.b16 %v814
        %v847 = vunpack.c.l.b16 %v815
        %v848 = vunpack.c.l.b16 %v816
        %v849 = vunpack.c.l.b16 %v817
        %v850 = vunpack.c.l.b16 %v818
        %v851 = vunpack.c.l.b16 %v819
        %v852 = vunpack.c.l.b16 %v820
        %v853 = vunpack.c.l.b16 %v821
        %v854 = vunpack.c.l.b16 %v822
        %v855 = vunpack.c.l.b16 %v823
        %v856 = vunpack.c.l.b16 %v824
        %v857 = vunpack.c.l.b16 %v825
        %v858 = vunpack.c.l.b16 %v826
        %v859 = vunpack.c.l.b16 %v827
        %v860 = vunpack.c.l.b16 %v828
        %v861 = vpack.c.b16 %v846, %v845
        %v862 = vpack.c.b16 %v848, %v847
        %v863 = vpack.c.b16 %v850, %v849
        %v864 = vpack.c.b16 %v852, %v851
        %v865 = vpack.c.b16 %v854, %v853
        %v866 = vpack.c.b16 %v856, %v855
        %v867 = vpack.c.b16 %v858, %v857
        %v868 = vpack.c.b16 %v860, %v859
        %877 = vmatprep.subr.bf16.mxu0 0
        %878 = vmatpush1.bf16.msra.mxu0 %v861
        %879 = vmatprep.subr.bf16.mxu0 0
        %880 = vmatpush1.bf16.msra.mxu0 %v862
        %881 = vmatprep.subr.bf16.mxu0 0
        %882 = vmatpush1.bf16.msra.mxu0 %v863
        %883 = vmatprep.subr.bf16.mxu0 0
        %884 = vmatpush1.bf16.msra.mxu0 %v864
        %885 = vmatprep.subr.bf16.mxu0 0
        %886 = vmatpush1.bf16.msra.mxu0 %v865
        %887 = vmatprep.subr.bf16.mxu0 0
        %888 = vmatpush1.bf16.msra.mxu0 %v866
        %889 = vmatprep.subr.bf16.mxu0 0
        %890 = vmatpush1.bf16.msra.mxu0 %v867
        %891 = vmatprep.subr.bf16.mxu0 0
        %892 = vmatpush1.bf16.msra.mxu0 %v868
        %893 = vmatprep.subr.bf16.mxu0 0
        %894 = vmatpush1.bf16.msra.mxu0 0
        %895 = vmatprep.subr.bf16.mxu0 0
        %896 = vmatpush1.bf16.msra.mxu0 0
        %897 = vmatprep.subr.bf16.mxu0 0
        %898 = vmatpush1.bf16.msra.mxu0 0
        %899 = vmatprep.subr.bf16.mxu0 0
        %900 = vmatpush1.bf16.msra.mxu0 0
        %901 = vmatprep.subr.bf16.mxu0 0
        %902 = vmatpush1.bf16.msra.mxu0 0
        %903 = vmatprep.subr.bf16.mxu0 0
        %904 = vmatpush1.bf16.msra.mxu0 0
        %905 = vmatprep.subr.bf16.mxu0 0
        %906 = vmatpush1.bf16.msra.mxu0 0
        %907 = vmatprep.subr.bf16.mxu0 0
        %908 = vmatpush1.bf16.msra.mxu0 0
        %909 = vmatprep.mubr.bf16.mxu0 0
        %910 = vmatmul.mubr.bf16.gmra.mrb[0].mxu0 %v809
        %v911 = vpop.f32.mrb[0].mxu0
        %v912 = vadd.f32 %v779, %v911
        %v913 = vpop.f32.mrb[0].mxu0
        %v914 = vpop.f32.mrb[0].mxu0
        %v915 = vadd.f32 %v782, %v914
        %v916 = vpop.f32.mrb[0].mxu0
        %917 = vmatprep.mubr.bf16.mxu0 0
        %918 = vmatmul.mubr.bf16.gmra.mrb[0].mxu0 %v810
        %v919 = vpop.f32.mrb[0].mxu0
        %v920 = vadd.f32 %v787, %v919
        %v921 = vpop.f32.mrb[0].mxu0
        %v922 = vpop.f32.mrb[0].mxu0
        %v923 = vadd.f32 %v790, %v922
        %v924 = vpop.f32.mrb[0].mxu0
        %925 = vmatprep.mubr.bf16.mxu0 0
        %926 = vmatmul.mubr.bf16.gmra.mrb[0].mxu0 %v811
        %v927 = vpop.f32.mrb[0].mxu0
        %v928 = vadd.f32 %v795, %v927
        %v929 = vpop.f32.mrb[0].mxu0
        %v930 = vpop.f32.mrb[0].mxu0
        %v931 = vadd.f32 %v798, %v930
        %v932 = vpop.f32.mrb[0].mxu0
        %933 = vmatprep.mubr.bf16.mxu0 0
        %934 = vmatmul.mubr.bf16.gmra.mrb[0].mxu0 %v812
        %v935 = vpop.f32.mrb[0].mxu0
        %v936 = vadd.f32 %v803, %v935
        %v937 = vpop.f32.mrb[0].mxu0
        %v938 = vpop.f32.mrb[0].mxu0
        %v939 = vadd.f32 %v806, %v938
        %v940 = vpop.f32.mrb[0].mxu0
        %941 = vdwg.mxu0
        %v942 = vld [vmem:[%s6] sm:$0x1]
        %v944 = vlaneseq
        %v945 = vshrl.u32 %v944, 7
        %v946 = vsub.s32 0, %v945
        %v947 = vrot.slane %v942, %v946
        %v949 = vadd.f32 %v912, %v947
        %v950 = vadd.f32 %v915, %v947
        %v951 = vadd.f32 %v920, %v947
        %v952 = vadd.f32 %v923, %v947
        %v953 = vadd.f32 %v928, %v947
        %v954 = vadd.f32 %v931, %v947
        %v955 = vadd.f32 %v936, %v947
        %v956 = vadd.f32 %v939, %v947
        %v957 = vmax.f32 %v949, 0.0
        %v958 = vmax.f32 %v950, 0.0
        %v959 = vmax.f32 %v951, 0.0
        %v960 = vmax.f32 %v952, 0.0
        %v961 = vmax.f32 %v953, 0.0
        %v962 = vmax.f32 %v954, 0.0
        %v963 = vmax.f32 %v955, 0.0
        %v964 = vmax.f32 %v956, 0.0
        %v965 = vadd.f32 %v957, %v958
        %v966 = vadd.f32 %v965, %v959
        %v967 = vadd.f32 %v966, %v960
        %v968 = vadd.f32 %v967, %v961
        %v969 = vadd.f32 %v968, %v962
        %v970 = vadd.f32 %v969, %v963
        %v971 = vadd.f32 %v970, %v964
        %v972 = vrot.slane %v971, 4
        %v973 = vadd.f32 %v971, %v972
        %v974 = vrot.slane %v973, 2
        %v975 = vadd.f32 %v973, %v974
        %v976 = vrot.slane %v975, 1
        %v977 = vadd.f32 %v975, %v976
        %v978 = vld [vmem:[%s7] sm:$0xff]
        %v979 = vld [vmem:[%s7 + $0x8] sm:$0xff]
        %v980 = vld [vmem:[%s7 + $0x10] sm:$0xff]
        %v981 = vld [vmem:[%s7 + $0x18] sm:$0xff]
        %v982 = vld [vmem:[%s7 + $0x20] sm:$0xff]
        %v983 = vld [vmem:[%s7 + $0x28] sm:$0xff]
        %v984 = vld [vmem:[%s7 + $0x30] sm:$0xff]
        %v985 = vld [vmem:[%s7 + $0x38] sm:$0xff]
        %v986 = vld [vmem:[%s7 + $0x40] sm:$0xff]
        %v987 = vld [vmem:[%s7 + $0x48] sm:$0xff]
        %v988 = vld [vmem:[%s7 + $0x50] sm:$0xff]
        %v989 = vld [vmem:[%s7 + $0x58] sm:$0xff]
        %v990 = vld [vmem:[%s7 + $0x60] sm:$0xff]
        %v991 = vld [vmem:[%s7 + $0x68] sm:$0xff]
        %v992 = vld [vmem:[%s7 + $0x70] sm:$0xff]
        %v993 = vld [vmem:[%s7 + $0x78] sm:$0xff]
        %v994 = vld [vmem:[%s8] sm:$0x1]
        %995 = vmatprep.subr.mxu0 0.0
        %996 = vmatpush1.msra.mxu0 %v978
        %997 = vmatprep.subr.mxu0 0.0
        %998 = vmatpush1.msra.mxu0 %v979
        %999 = vmatprep.subr.mxu0 0.0
        %1000 = vmatpush1.msra.mxu0 %v980
        %1001 = vmatprep.subr.mxu0 0.0
        %1002 = vmatpush1.msra.mxu0 %v981
        %1003 = vmatprep.subr.mxu0 0.0
        %1004 = vmatpush1.msra.mxu0 %v982
        %1005 = vmatprep.subr.mxu0 0.0
        %1006 = vmatpush1.msra.mxu0 %v983
        %1007 = vmatprep.subr.mxu0 0.0
        %1008 = vmatpush1.msra.mxu0 %v984
        %1009 = vmatprep.subr.mxu0 0.0
        %1010 = vmatpush1.msra.mxu0 %v985
        %1011 = vmatprep.subr.mxu0 0.0
        %1012 = vmatpush1.msra.mxu0 %v986
        %1013 = vmatprep.subr.mxu0 0.0
        %1014 = vmatpush1.msra.mxu0 %v987
        %1015 = vmatprep.subr.mxu0 0.0
        %1016 = vmatpush1.msra.mxu0 %v988
        %1017 = vmatprep.subr.mxu0 0.0
        %1018 = vmatpush1.msra.mxu0 %v989
        %1019 = vmatprep.subr.mxu0 0.0
        %1020 = vmatpush1.msra.mxu0 %v990
        %1021 = vmatprep.subr.mxu0 0.0
        %1022 = vmatpush1.msra.mxu0 %v991
        %1023 = vmatprep.subr.mxu0 0.0
        %1024 = vmatpush1.msra.mxu0 %v992
        %1025 = vmatprep.subr.mxu0 0.0
        %1026 = vmatpush1.msra.mxu0 %v993
        %1027 = vmatprep.subr.mxu0 0.0
        %1028 = vmatpush1.msra.mxu0 0.0
        %1029 = vmatprep.subr.mxu0 0.0
        %1030 = vmatpush1.msra.mxu0 0.0
        %1031 = vmatprep.subr.mxu0 0.0
        %1032 = vmatpush1.msra.mxu0 0.0
        %1033 = vmatprep.subr.mxu0 0.0
        %1034 = vmatpush1.msra.mxu0 0.0
        %1035 = vmatprep.subr.mxu0 0.0
        %1036 = vmatpush1.msra.mxu0 0.0
        %1037 = vmatprep.subr.mxu0 0.0
        %1038 = vmatpush1.msra.mxu0 0.0
        %1039 = vmatprep.subr.mxu0 0.0
        %1040 = vmatpush1.msra.mxu0 0.0
        %1041 = vmatprep.subr.mxu0 0.0
        %1042 = vmatpush1.msra.mxu0 0.0
        %1043 = vmatprep.subr.mxu0 0.0
        %1044 = vmatpush1.msra.mxu0 0.0
        %1045 = vmatprep.subr.mxu0 0.0
        %1046 = vmatpush1.msra.mxu0 0.0
        %1047 = vmatprep.subr.mxu0 0.0
        %1048 = vmatpush1.msra.mxu0 0.0
        %1049 = vmatprep.subr.mxu0 0.0
        %1050 = vmatpush1.msra.mxu0 0.0
        %1051 = vmatprep.subr.mxu0 0.0
        %1052 = vmatpush1.msra.mxu0 0.0
        %1053 = vmatprep.subr.mxu0 0.0
        %1054 = vmatpush1.msra.mxu0 0.0
        %1055 = vmatprep.subr.mxu0 0.0
        %1056 = vmatpush1.msra.mxu0 0.0
        %1057 = vmatprep.subr.mxu0 0.0
        %1058 = vmatpush1.msra.mxu0 0.0
        %1059 = vmatprep.mubr.f32.mxu0 0.0
        %1060 = vmatmul.mubr.f32.gmra.mrb[0].mxu0 %v977
        %v1061 = vpop.f32.mrb[0].mxu0
        %v1062 = vadd.f32 %v994, %v1061
        %v1063 = vpop.f32.mrb[0].mxu0
        %1064 = vdwg.mxu0
        %1065 = vst [vmem:[%s339] sm:$0x1] %v1062
        %s1066 = sand.u32 %s230, 1
        %s1067 = scalar_lea.sflag [#allocation3], %s1066
        %s1068 = sand.u32 %s230, 1
        %s1069 = scalar_lea.vmem [#allocation2], %s1068
        // Predicated region
        $region57: #{efficientnet_b4_with_elayer.1} parent=55 // pred_check
          %p1070 = pneg %p240
        $region58: #{efficientnet_b4_with_elayer.1} parent=55 // pred_check_branch
          %1072 = sbr.rel (%p1070) target = $region60
        $region59: #{efficientnet_b4_with_elayer.1} parent=55 // pred_region
          %s1074 = ssub.s32 16, 16
          %1075 = vsyncadd %s1067, %s1074
          %s1076 = smul.addr %s23, 16
          %s1077 = scalar_lea.hbm %s9, %s1076
          %s1079 = sshll.u32 %s1069, 4
          %s1080 = int_to_ptr.vmem [resolvable:$true] %s1079
          %1082 = dma.vmem_to_hbm [thread:$0]  %s1080, 16, %s1077, %s1067
        $region60: #{efficientnet_b4_with_elayer.1} parent=55 // pred_fallthru
          _
      $region56: #{efficientnet_b4_with_elayer.1} parent=5 // pred_fallthru
        _
      %p1083 = scmp.le.s32.totalorder 2, %s18
      // Predicated region
      $region61: #{efficientnet_b4_with_elayer.1} parent=5 // pred_check
        %p1084 = pneg %p1083
      $region62: #{efficientnet_b4_with_elayer.1} parent=5 // pred_check_branch
        %1086 = sbr.rel (%p1084) target = $region64
      $region63: #{efficientnet_b4_with_elayer.1} parent=5 // pred_region
        %s1087 = ssub.s32 %s18, 2
        // Predicated region
        $region65: #{efficientnet_b4_with_elayer.1} parent=63 // pred_check
          %p1088 = pneg %p246
        $region66: #{efficientnet_b4_with_elayer.1} parent=63 // pred_check_branch
          %1090 = sbr.rel (%p1088) target = $region68
        $region67: #{efficientnet_b4_with_elayer.1} parent=63 // pred_region
          %s1091 = sand.u32 %s231, 1
          %s1092 = scalar_lea.sflag [#allocation3], %s1091
          %s1093 = sand.u32 %s231, 1
          %s1094 = scalar_lea.vmem [#allocation2], %s1093
          %1095 = dma.done %s1092, 16
        $region68: #{efficientnet_b4_with_elayer.1} parent=63 // pred_fallthru
          _
      $region64: #{efficientnet_b4_with_elayer.1} parent=5 // pred_fallthru
        _
    $region6: #{efficientnet_b4_with_elayer.1} parent=1 // loop_footer
      %s22 = sadd.s32 1, %s18
    $region7: #{efficientnet_b4_with_elayer.1} parent=1 // loop_footer_branch
      %17 = sbr.rel target = $region3
    $region8: #{efficientnet_b4_with_elayer.1} parent=1 // loop_exit
      _
    %1096 = vsyncpa [#allocation3], 1
    %s1097 = scalar_lea.sflag [#allocation3], 1
    %1098 = vsyncpa %s1097, 1

</llo_original>
